<compile_context>
chip_gen: v7x
topology: tpu7x:2x2x1
jax: 0.10.0
libtpu: 0.0.40
codegen_flags: <defaults>
</compile_context>

<pallas_src>
import functools

import jax
import jax.numpy as jnp
from jax import lax
from jax.experimental import pallas as pl
from jax.experimental.pallas import tpu as pltpu


def _softmax_key_kernel(logits_ref, labels_ref, key_ref):
    """Per-pixel softmax over classes -> packed descending sort key.

    key = ~((bitcast(|fg - prob|) << 1) | fg) as int32.  err is in [0, 1] so
    its float bits are non-negative and monotone; ascending sort of the key is
    a descending sort on (err, fg), and both are recovered exactly in kernel 2.
    """
    x = logits_ref[...]                                    # (C, Tpix) f32
    lbl = labels_ref[...]                                  # (1, Tpix) i32
    m = jnp.max(x, axis=0, keepdims=True)
    e = jnp.exp(x - m)
    probs = e * (1.0 / jnp.sum(e, axis=0, keepdims=True))  # softmax over dim=1 of NCHW
    cls = lax.broadcasted_iota(jnp.int32, x.shape, 0)
    fg_i = (lbl == cls).astype(jnp.int32)
    err = jnp.abs(fg_i.astype(jnp.float32) - probs)        # in [0, 1]
    bits = pltpu.bitcast(err, jnp.int32)                   # non-negative float bits
    key_ref[...] = ~((bits << 1) | fg_i)


def _lovasz_kernel(gts_ref, key_ref, out_ref, tri_ref, carry_ref, *, n_valid, chunk):
    """P-tiled lovasz reduction over per-class descending-sorted packed keys."""
    k = pl.program_id(1)
    cg, t_blk = key_ref.shape
    n_chunks = t_blk // chunk

    @pl.when(k == 0)
    def _init():
        row = lax.broadcasted_iota(jnp.int32, (chunk, chunk), 0)
        col = lax.broadcasted_iota(jnp.int32, (chunk, chunk), 1)
        tri_ref[...] = (row <= col).astype(jnp.bfloat16)   # tri[j, i] = 1 iff j <= i
        carry_ref[...] = jnp.zeros_like(carry_ref)
        out_ref[...] = jnp.zeros_like(out_ref)

    gts = gts_ref[...]                                     # (Cg, 1) per-class fg counts
    tri = tri_ref[...]
    carry = carry_ref[...]                                 # running cum_fg across tiles
    base = k * t_blk
    acc = jnp.zeros((cg, 1), jnp.float32)

    # Inner MXU-width cumsum chunks, statically unrolled (DMA block >> chunk).
    for j in range(n_chunks):
        c0 = j * chunk
        packed = ~key_ref[:, c0:c0 + chunk]                # (Cg, chunk) i32, >=0 when valid
        fg = (packed & 1).astype(jnp.float32)
        err = pltpu.bitcast(packed >> 1, jnp.float32)
        pos_i = base + (c0 + 1) + lax.broadcasted_iota(jnp.int32, (cg, chunk), 1)
        valid = pos_i <= n_valid                           # masks the ragged last tile
        fg = jnp.where(valid, fg, 0.0)
        err = jnp.where(valid, err, 0.0)

        # Blocked inclusive cumsum of fg along the sorted pixel axis: bf16 MXU
        # matmul against the reusable triangular scratch (exact for 0/1 values)
        # plus the cross-chunk carry; new carry is simply the last column.
        cum_fg = jnp.dot(fg.astype(jnp.bfloat16), tri,
                         preferred_element_type=jnp.float32) + carry
        carry = cum_fg[:, chunk - 1:chunk]

        # Closed-form lovasz gradient (one divide):
        #   fg==1: jac[i]-jac[i-1] = 1 / union            (union_prev == union)
        #   fg==0: jac[i]-jac[i-1] = inter / (union * union_prev)
        # -> grad = select(fg, union, inter) / (union * union_prev).
        # The max(.,1) clamp only triggers for absent classes, which the
        # wrapper masks out.
        pos = pos_i.astype(jnp.float32)
        inter = gts - cum_fg
        union = gts + pos - cum_fg
        union_prev = union - 1.0 + fg
        grad = jnp.where(fg > 0.5, union, inter) / jnp.maximum(union * union_prev, 1.0)
        acc = acc + jnp.sum(err * grad, axis=-1, keepdims=True)

    carry_ref[...] = carry
    out_ref[...] = out_ref[...] + acc                      # out block resident across k


def _pick_tile(size, candidates=(8192, 4096, 2048, 1024, 512, 256, 128)):
    for t in candidates:
        if size >= t and size % t == 0:
            return t
    return size


@jax.jit
def lovasz_loss_softmax(logits, labels):
    """logits: (N, C, H, W) float; labels: (N, H, W) int -> scalar f32 loss."""
    N, C, H, W = logits.shape
    HW = H * W
    P = N * HW
    logits_f32 = logits.astype(jnp.float32)
    labels_i32 = labels.astype(jnp.int32)

    # ---- Kernel 1: softmax + packed sort keys in a (C, P) layout via out index_map.
    if HW % 128 == 0 and HW >= 128:
        # Read NCHW directly; the (C, P) re-layout happens for free through the
        # output index_map (no extra HBM transpose pass over the logits).
        x = logits_f32.reshape(N, C, HW)
        lbl = labels_i32.reshape(N, 1, HW)
        n_img = N
        t_pix = _pick_tile(HW)
        n_tiles = HW // t_pix
    else:
        if N == 1:
            x = logits_f32.reshape(1, C, HW)
        else:
            # TODO(synk): odd spatial sizes with N > 1 fall back to an XLA transpose.
            x = jnp.transpose(logits_f32, (1, 0, 2, 3)).reshape(1, C, P)
        lbl = labels_i32.reshape(1, 1, P)
        n_img = 1
        # Cap the tile (the ragged last tile's OOB writes are dropped) so a huge
        # odd-sized image can never blow past VMEM (v7x: 64 MiB physical).
        t_pix = 8192 if P >= 8192 else ((P // 128) * 128 if P >= 128 else P)
        n_tiles = -(-P // t_pix)

    keys = pl.pallas_call(
        _softmax_key_kernel,
        grid=(n_img, n_tiles),
        in_specs=[
            pl.BlockSpec((None, C, t_pix), lambda n, t: (n, 0, t)),
            pl.BlockSpec((None, 1, t_pix), lambda n, t: (n, 0, t)),
        ],
        out_specs=pl.BlockSpec((C, t_pix), lambda n, t: (0, n * n_tiles + t)),
        out_shape=jax.ShapeDtypeStruct((C, P), jnp.int32),
        compiler_params=pltpu.CompilerParams(
            dimension_semantics=("parallel", "parallel")),
    )(x, lbl)

    # Per-class foreground pixel counts straight from the labels (reads P ints
    # instead of re-reading a (C, P) fg array from HBM).
    gts = jnp.sum(
        (labels_i32.reshape(1, -1) == jnp.arange(C, dtype=jnp.int32)[:, None])
        .astype(jnp.float32), axis=1, keepdims=True)               # (C, 1)

    # TODO(synk): the per-class descending sort (torch.sort) has no Pallas TPU
    # lowering; done with a single-operand jax.lax.sort between the two kernels.
    keys_sorted = lax.sort(keys, dimension=-1)

    # ---- Kernel 2 tiling: big DMA block, MXU-sized inner cumsum chunk.
    try:
        kind = jax.devices()[0].device_kind.lower()
    except Exception:  # pragma: no cover
        kind = ""
    chunk = 128 if any(v in kind for v in ("v2", "v3", "v4", "v5")) else 256
    if P >= chunk:
        t_blk = min(16 * chunk, (P // chunk) * chunk)
    else:
        chunk = P
        t_blk = P
    n_ptiles = -(-P // t_blk)

    # Optional class-group "parallel" axis (lets v7x's two TensorCores split the
    # classes); a single group for small / non-multiple-of-8 class counts.
    c_grp = 8 if (C >= 16 and C % 8 == 0) else C
    n_cgroups = C // c_grp

    per_class = pl.pallas_call(
        functools.partial(_lovasz_kernel, n_valid=P, chunk=chunk),
        grid=(n_cgroups, n_ptiles),
        in_specs=[
            pl.BlockSpec((c_grp, 1), lambda g, k: (g, 0)),
            pl.BlockSpec((c_grp, t_blk), lambda g, k: (g, k)),
        ],
        out_specs=pl.BlockSpec((c_grp, 1), lambda g, k: (g, 0)),
        out_shape=jax.ShapeDtypeStruct((C, 1), jnp.float32),
        scratch_shapes=[
            pltpu.VMEM((chunk, chunk), jnp.bfloat16),   # triangular cumsum matrix
            pltpu.VMEM((c_grp, 1), jnp.float32),        # running cum_fg carry
        ],
        compiler_params=pltpu.CompilerParams(
            dimension_semantics=("parallel", "arbitrary")),
    )(gts, keys_sorted)

    present = (gts[:, 0] > 0.0).astype(jnp.float32)
    # NOTE: all classes absent -> 0/0 == NaN, matching the PyTorch reference.
    return jnp.sum(per_class[:, 0] * present) / jnp.sum(present)


def lovasz_loss_softmax_ref(logits, labels):
    """Pure-JAX reference matching the PyTorch lovasz_softmax semantics."""
    N, C, H, W = logits.shape
    probs = jax.nn.softmax(logits.astype(jnp.float32), axis=1)
    probs_f = jnp.transpose(probs, (0, 2, 3, 1)).reshape(-1, C)
    labels_f = labels.reshape(-1)
    losses, presents = [], []
    for c in range(C):
        fg = (labels_f == c).astype(jnp.float32)
        errors = jnp.abs(fg - probs_f[:, c])
        order = jnp.argsort(-errors)
        e_s = errors[order]
        fg_s = fg[order]
        gts = fg_s.sum()
        inter = gts - jnp.cumsum(fg_s)
        union = gts + jnp.cumsum(1.0 - fg_s)
        jac = 1.0 - inter / union
        grad = jnp.concatenate([jac[:1], jac[1:] - jac[:-1]])
        losses.append(jnp.dot(e_s, grad))
        presents.append((gts > 0).astype(jnp.float32))
    losses = jnp.stack(losses)
    presents = jnp.stack(presents)
    return jnp.sum(losses * presents) / jnp.sum(presents)


if __name__ == "__main__":
    key = jax.random.PRNGKey(0)
    k1, k2 = jax.random.split(key)
    N, C, H, W = 2, 4, 16, 16
    logits = jax.random.normal(k1, (N, C, H, W), dtype=jnp.float32)
    labels = jax.random.randint(k2, (N, H, W), 0, C, dtype=jnp.int32)

    loss = jax.block_until_ready(lovasz_loss_softmax(logits, labels))
    ref = jax.block_until_ready(lovasz_loss_softmax_ref(logits, labels))

    assert jnp.isfinite(loss), float(loss)
    assert abs(float(loss) - float(ref)) < 2e-4, (float(loss), float(ref))
    print("KERNEL_OK")
</pallas_src>

<mosaic_0001>
module attributes {stable_mosaic.version = 11 : i64} {
  func.func @_softmax_key_kernel(%arg0: i32, %arg1: i32, %arg2: memref<1x4x256xf32, #tpu.memory_space<vmem>>, %arg3: memref<1x1x256xi32, #tpu.memory_space<vmem>>, %arg4: memref<4x256xi32, #tpu.memory_space<vmem>>) attributes {dimension_semantics = [#tpu.dimension_semantics<parallel>, #tpu.dimension_semantics<parallel>], iteration_bounds = array<i64: 2, 1>, scalar_prefetch = 0 : i64, scratch_operands = 0 : i64, tpu.core_type = #tpu.core_type<tc>, window_params = [{transform_indices = @transform_0, window_bounds = array<i64: 1, 4, 256>}, {transform_indices = @transform_1, window_bounds = array<i64: 1, 1, 256>}, {transform_indices = @transform_2, window_bounds = array<i64: 4, 256>}]} {
    %c0 = arith.constant 0 : index
    %c0_0 = arith.constant 0 : index
    %c0_1 = arith.constant 0 : index
    %0 = vector.load %arg2[%c0, %c0_0, %c0_1] : memref<1x4x256xf32, #tpu.memory_space<vmem>>, vector<1x4x256xf32>
    %1 = vector.shape_cast %0 : vector<1x4x256xf32> to vector<4x256xf32>
    %c0_2 = arith.constant 0 : index
    %c0_3 = arith.constant 0 : index
    %c0_4 = arith.constant 0 : index
    %2 = vector.load %arg3[%c0_2, %c0_3, %c0_4] : memref<1x1x256xi32, #tpu.memory_space<vmem>>, vector<1x1x256xi32>
    %3 = vector.shape_cast %2 : vector<1x1x256xi32> to vector<1x256xi32>
    %cst = arith.constant dense<0xFF800000> : vector<256xf32>
    %4 = vector.multi_reduction <maximumf>, %1, %cst [0] : vector<4x256xf32> to vector<256xf32>
    %5 = vector.shape_cast %4 : vector<256xf32> to vector<1x256xf32>
    %6 = vector.broadcast %5 : vector<1x256xf32> to vector<4x256xf32>
    %7 = arith.subf %1, %6 : vector<4x256xf32>
    %8 = math.exp %7 : vector<4x256xf32>
    %cst_5 = arith.constant dense<0.000000e+00> : vector<256xf32>
    %9 = vector.multi_reduction <add>, %8, %cst_5 [0] : vector<4x256xf32> to vector<256xf32>
    %10 = vector.shape_cast %9 : vector<256xf32> to vector<1x256xf32>
    %cst_6 = arith.constant 1.000000e+00 : f32
    %11 = vector.broadcast %cst_6 : f32 to vector<1x256xf32>
    %12 = arith.divf %11, %10 : vector<1x256xf32>
    %13 = vector.broadcast %12 : vector<1x256xf32> to vector<4x256xf32>
    %14 = arith.mulf %8, %13 : vector<4x256xf32>
    %15 = tpu.iota {dimensions = array<i32: 0>} : vector<4x256xi32>
    %16 = vector.broadcast %3 : vector<1x256xi32> to vector<4x256xi32>
    %17 = arith.cmpi eq, %16, %15 : vector<4x256xi32>
    %18 = arith.extui %17 : vector<4x256xi1> to vector<4x256xi32>
    %19 = arith.sitofp %18 : vector<4x256xi32> to vector<4x256xf32>
    %20 = arith.subf %19, %14 : vector<4x256xf32>
    %21 = math.absf %20 : vector<4x256xf32>
    %22 = tpu.bitcast %21 : vector<4x256xf32> -> vector<4x256xi32>
    %c1_i32 = arith.constant 1 : i32
    %23 = vector.broadcast %c1_i32 : i32 to vector<4x256xi32>
    %24 = arith.shli %22, %23 : vector<4x256xi32>
    %25 = arith.ori %24, %18 : vector<4x256xi32>
    %cst_7 = arith.constant dense<-1> : vector<4x256xi32>
    %26 = arith.xori %25, %cst_7 : vector<4x256xi32>
    %c0_8 = arith.constant 0 : index
    %c0_9 = arith.constant 0 : index
    %27 = vector.load %arg4[%c0_8, %c0_9] : memref<4x256xi32, #tpu.memory_space<vmem>>, vector<4x256xi32>
    tpu.vector_store %arg4[%c0_8, %c0_9], %26 {strides = array<i32>} : memref<4x256xi32, #tpu.memory_space<vmem>>, vector<4x256xi32>,
    return
  }
  func.func @transform_0(%arg0: i32, %arg1: i32) -> (i32, i32, i32) {
    %c0_i32 = arith.constant 0 : i32
    %c0_i32_0 = arith.constant 0 : i32
    return %arg0, %c0_i32, %arg1 : i32, i32, i32
  }
  func.func @transform_1(%arg0: i32, %arg1: i32) -> (i32, i32, i32) {
    %c0_i32 = arith.constant 0 : i32
    %c0_i32_0 = arith.constant 0 : i32
    return %arg0, %c0_i32, %arg1 : i32, i32, i32
  }
  func.func @transform_2(%arg0: i32, %arg1: i32) -> (i32, i32) {
    %c1_i32 = arith.constant 1 : i32
    %0 = arith.muli %arg0, %c1_i32 : i32
    %1 = arith.addi %0, %arg1 : i32
    %c0_i32 = arith.constant 0 : i32
    %c0_i32_0 = arith.constant 0 : i32
    return %c0_i32, %1 : i32, i32
  }
}

module attributes {stable_mosaic.version = 11 : i64} {
  func.func @_lovasz_kernel(%arg0: i32, %arg1: i32, %arg2: memref<4x1xf32, #tpu.memory_space<vmem>>, %arg3: memref<4x512xi32, #tpu.memory_space<vmem>>, %arg4: memref<4x1xf32, #tpu.memory_space<vmem>>, %arg5: memref<256x256xbf16, #tpu.memory_space<vmem>>, %arg6: memref<4x1xf32, #tpu.memory_space<vmem>>) attributes {dimension_semantics = [#tpu.dimension_semantics<parallel>, #tpu.dimension_semantics<arbitrary>], iteration_bounds = array<i64: 1, 1>, scalar_prefetch = 0 : i64, scratch_operands = 2 : i64, tpu.core_type = #tpu.core_type<tc>, window_params = [{transform_indices = @transform_0, window_bounds = array<i64: 4, 1>}, {transform_indices = @transform_1, window_bounds = array<i64: 4, 512>}, {transform_indices = @transform_2, window_bounds = array<i64: 4, 1>}]} {
    %c0_i32 = arith.constant 0 : i32
    %0 = arith.cmpi eq, %arg1, %c0_i32 : i32
    %1 = arith.extui %0 : i1 to i32
    %c0_i32_0 = arith.constant 0 : i32
    %2 = arith.cmpi ne, %1, %c0_i32_0 : i32
    scf.if %2 {
      %98 = tpu.iota {dimensions = array<i32: 0>} : vector<256x256xi32>
      %99 = tpu.iota {dimensions = array<i32: 1>} : vector<256x256xi32>
      %100 = arith.cmpi sle, %98, %99 : vector<256x256xi32>
      %101 = arith.extui %100 : vector<256x256xi1> to vector<256x256xi32>
      %102 = arith.sitofp %101 : vector<256x256xi32> to vector<256x256xf32>
      %103 = arith.truncf %102 : vector<256x256xf32> to vector<256x256xbf16>
      %c0_37 = arith.constant 0 : index
      %c0_38 = arith.constant 0 : index
      %104 = vector.load %arg5[%c0_37, %c0_38] : memref<256x256xbf16, #tpu.memory_space<vmem>>, vector<256x256xbf16>
      tpu.vector_store %arg5[%c0_37, %c0_38], %103 {strides = array<i32>} : memref<256x256xbf16, #tpu.memory_space<vmem>>, vector<256x256xbf16>,
      %cst_39 = arith.constant 0.000000e+00 : f32
      %105 = vector.broadcast %cst_39 : f32 to vector<4x1xf32>
      %c0_40 = arith.constant 0 : index
      %c0_41 = arith.constant 0 : index
      %106 = vector.load %arg6[%c0_40, %c0_41] : memref<4x1xf32, #tpu.memory_space<vmem>>, vector<4x1xf32>
      tpu.vector_store %arg6[%c0_40, %c0_41], %105 {strides = array<i32>} : memref<4x1xf32, #tpu.memory_space<vmem>>, vector<4x1xf32>,
      %cst_42 = arith.constant 0.000000e+00 : f32
      %107 = vector.broadcast %cst_42 : f32 to vector<4x1xf32>
      %c0_43 = arith.constant 0 : index
      %c0_44 = arith.constant 0 : index
      %108 = vector.load %arg4[%c0_43, %c0_44] : memref<4x1xf32, #tpu.memory_space<vmem>>, vector<4x1xf32>
      tpu.vector_store %arg4[%c0_43, %c0_44], %107 {strides = array<i32>} : memref<4x1xf32, #tpu.memory_space<vmem>>, vector<4x1xf32>,
    } else {
    }
    %c0 = arith.constant 0 : index
    %c0_1 = arith.constant 0 : index
    %3 = vector.load %arg2[%c0, %c0_1] : memref<4x1xf32, #tpu.memory_space<vmem>>, vector<4x1xf32>
    %c0_2 = arith.constant 0 : index
    %c0_3 = arith.constant 0 : index
    %4 = vector.load %arg5[%c0_2, %c0_3] : memref<256x256xbf16, #tpu.memory_space<vmem>>, vector<256x256xbf16>
    %c0_4 = arith.constant 0 : index
    %c0_5 = arith.constant 0 : index
    %5 = vector.load %arg6[%c0_4, %c0_5] : memref<4x1xf32, #tpu.memory_space<vmem>>, vector<4x1xf32>
    %c512_i32 = arith.constant 512 : i32
    %6 = arith.muli %arg1, %c512_i32 : i32
    %cst = arith.constant 0.000000e+00 : f32
    %7 = vector.broadcast %cst : f32 to vector<4x1xf32>
    %c0_6 = arith.constant 0 : index
    %c0_7 = arith.constant 0 : index
    %8 = vector.load %arg3[%c0_6, %c0_7] : memref<4x512xi32, #tpu.memory_space<vmem>>, vector<4x256xi32>
    %cst_8 = arith.constant dense<-1> : vector<4x256xi32>
    %9 = arith.xori %8, %cst_8 : vector<4x256xi32>
    %c1_i32 = arith.constant 1 : i32
    %10 = vector.broadcast %c1_i32 : i32 to vector<4x256xi32>
    %11 = arith.andi %9, %10 : vector<4x256xi32>
    %12 = arith.sitofp %11 : vector<4x256xi32> to vector<4x256xf32>
    %c1_i32_9 = arith.constant 1 : i32
    %13 = vector.broadcast %c1_i32_9 : i32 to vector<4x256xi32>
    %14 = arith.shrsi %9, %13 : vector<4x256xi32>
    %15 = tpu.bitcast %14 : vector<4x256xi32> -> vector<4x256xf32>
    %c1_i32_10 = arith.constant 1 : i32
    %16 = arith.addi %6, %c1_i32_10 : i32
    %17 = tpu.iota {dimensions = array<i32: 1>} : vector<4x256xi32>
    %18 = vector.broadcast %16 : i32 to vector<4x256xi32>
    %19 = arith.addi %18, %17 : vector<4x256xi32>
    %c512_i32_11 = arith.constant 512 : i32
    %20 = vector.broadcast %c512_i32_11 : i32 to vector<4x256xi32>
    %21 = arith.cmpi sle, %19, %20 : vector<4x256xi32>
    %cst_12 = arith.constant 0.000000e+00 : f32
    %22 = vector.broadcast %cst_12 : f32 to vector<4x256xf32>
    %23 = arith.select %21, %12, %22 : vector<4x256xi1>, vector<4x256xf32>
    %cst_13 = arith.constant 0.000000e+00 : f32
    %24 = vector.broadcast %cst_13 : f32 to vector<4x256xf32>
    %25 = arith.select %21, %15, %24 : vector<4x256xi1>, vector<4x256xf32>
    %26 = arith.truncf %23 : vector<4x256xf32> to vector<4x256xbf16>
    %cst_14 = arith.constant dense<0.000000e+00> : vector<4x256xf32>
    %27 = tpu.matmul %26, %4, %cst_14 {dimension_numbers = #tpu.dot_dimension_numbers<[1], [0], [0], [1], [0, 0, 1, 1], [], []>} : vector<4x256xbf16>, vector<256x256xbf16>, vector<4x256xf32> -> vector<4x256xf32>
    %28 = vector.broadcast %5 : vector<4x1xf32> to vector<4x256xf32>
    %29 = arith.addf %27, %28 : vector<4x256xf32>
    %30 = vector.extract_strided_slice %29 {offsets = [0, 255], sizes = [4, 1], strides = [1, 1]} : vector<4x256xf32> to vector<4x1xf32>
    %31 = arith.sitofp %19 : vector<4x256xi32> to vector<4x256xf32>
    %32 = vector.broadcast %3 : vector<4x1xf32> to vector<4x256xf32>
    %33 = arith.subf %32, %29 : vector<4x256xf32>
    %34 = vector.broadcast %3 : vector<4x1xf32> to vector<4x256xf32>
    %35 = arith.addf %34, %31 : vector<4x256xf32>
    %36 = arith.subf %35, %29 : vector<4x256xf32>
    %cst_15 = arith.constant 1.000000e+00 : f32
    %37 = vector.broadcast %cst_15 : f32 to vector<4x256xf32>
    %38 = arith.subf %36, %37 : vector<4x256xf32>
    %39 = arith.addf %38, %23 : vector<4x256xf32>
    %cst_16 = arith.constant 5.000000e-01 : f32
    %40 = vector.broadcast %cst_16 : f32 to vector<4x256xf32>
    %41 = arith.cmpf ogt, %23, %40 : vector<4x256xf32>
    %42 = arith.select %41, %36, %33 : vector<4x256xi1>, vector<4x256xf32>
    %43 = arith.mulf %36, %39 : vector<4x256xf32>
    %cst_17 = arith.constant 1.000000e+00 : f32
    %44 = vector.broadcast %cst_17 : f32 to vector<4x256xf32>
    %45 = arith.maximumf %43, %44 : vector<4x256xf32>
    %46 = arith.divf %42, %45 : vector<4x256xf32>
    %47 = arith.mulf %25, %46 : vector<4x256xf32>
    %cst_18 = arith.constant dense<0.000000e+00> : vector<4xf32>
    %48 = vector.multi_reduction <add>, %47, %cst_18 [1] : vector<4x256xf32> to vector<4xf32>
    %49 = vector.shape_cast %48 : vector<4xf32> to vector<4x1xf32>
    %50 = arith.addf %7, %49 : vector<4x1xf32>
    %c0_19 = arith.constant 0 : index
    %c256 = arith.constant 256 : index
    %51 = vector.load %arg3[%c0_19, %c256] : memref<4x512xi32, #tpu.memory_space<vmem>>, vector<4x256xi32>
    %cst_20 = arith.constant dense<-1> : vector<4x256xi32>
    %52 = arith.xori %51, %cst_20 : vector<4x256xi32>
    %c1_i32_21 = arith.constant 1 : i32
    %53 = vector.broadcast %c1_i32_21 : i32 to vector<4x256xi32>
    %54 = arith.andi %52, %53 : vector<4x256xi32>
    %55 = arith.sitofp %54 : vector<4x256xi32> to vector<4x256xf32>
    %c1_i32_22 = arith.constant 1 : i32
    %56 = vector.broadcast %c1_i32_22 : i32 to vector<4x256xi32>
    %57 = arith.shrsi %52, %56 : vector<4x256xi32>
    %58 = tpu.bitcast %57 : vector<4x256xi32> -> vector<4x256xf32>
    %c257_i32 = arith.constant 257 : i32
    %59 = arith.addi %6, %c257_i32 : i32
    %60 = tpu.iota {dimensions = array<i32: 1>} : vector<4x256xi32>
    %61 = vector.broadcast %59 : i32 to vector<4x256xi32>
    %62 = arith.addi %61, %60 : vector<4x256xi32>
    %c512_i32_23 = arith.constant 512 : i32
    %63 = vector.broadcast %c512_i32_23 : i32 to vector<4x256xi32>
    %64 = arith.cmpi sle, %62, %63 : vector<4x256xi32>
    %cst_24 = arith.constant 0.000000e+00 : f32
    %65 = vector.broadcast %cst_24 : f32 to vector<4x256xf32>
    %66 = arith.select %64, %55, %65 : vector<4x256xi1>, vector<4x256xf32>
    %cst_25 = arith.constant 0.000000e+00 : f32
    %67 = vector.broadcast %cst_25 : f32 to vector<4x256xf32>
    %68 = arith.select %64, %58, %67 : vector<4x256xi1>, vector<4x256xf32>
    %69 = arith.truncf %66 : vector<4x256xf32> to vector<4x256xbf16>
    %cst_26 = arith.constant dense<0.000000e+00> : vector<4x256xf32>
    %70 = tpu.matmul %69, %4, %cst_26 {dimension_numbers = #tpu.dot_dimension_numbers<[1], [0], [0], [1], [0, 0, 1, 1], [], []>} : vector<4x256xbf16>, vector<256x256xbf16>, vector<4x256xf32> -> vector<4x256xf32>
    %71 = vector.broadcast %30 : vector<4x1xf32> to vector<4x256xf32>
    %72 = arith.addf %70, %71 : vector<4x256xf32>
    %73 = vector.extract_strided_slice %72 {offsets = [0, 255], sizes = [4, 1], strides = [1, 1]} : vector<4x256xf32> to vector<4x1xf32>
    %74 = arith.sitofp %62 : vector<4x256xi32> to vector<4x256xf32>
    %75 = vector.broadcast %3 : vector<4x1xf32> to vector<4x256xf32>
    %76 = arith.subf %75, %72 : vector<4x256xf32>
    %77 = vector.broadcast %3 : vector<4x1xf32> to vector<4x256xf32>
    %78 = arith.addf %77, %74 : vector<4x256xf32>
    %79 = arith.subf %78, %72 : vector<4x256xf32>
    %cst_27 = arith.constant 1.000000e+00 : f32
    %80 = vector.broadcast %cst_27 : f32 to vector<4x256xf32>
    %81 = arith.subf %79, %80 : vector<4x256xf32>
    %82 = arith.addf %81, %66 : vector<4x256xf32>
    %cst_28 = arith.constant 5.000000e-01 : f32
    %83 = vector.broadcast %cst_28 : f32 to vector<4x256xf32>
    %84 = arith.cmpf ogt, %66, %83 : vector<4x256xf32>
    %85 = arith.select %84, %79, %76 : vector<4x256xi1>, vector<4x256xf32>
    %86 = arith.mulf %79, %82 : vector<4x256xf32>
    %cst_29 = arith.constant 1.000000e+00 : f32
    %87 = vector.broadcast %cst_29 : f32 to vector<4x256xf32>
    %88 = arith.maximumf %86, %87 : vector<4x256xf32>
    %89 = arith.divf %85, %88 : vector<4x256xf32>
    %90 = arith.mulf %68, %89 : vector<4x256xf32>
    %cst_30 = arith.constant dense<0.000000e+00> : vector<4xf32>
    %91 = vector.multi_reduction <add>, %90, %cst_30 [1] : vector<4x256xf32> to vector<4xf32>
    %92 = vector.shape_cast %91 : vector<4xf32> to vector<4x1xf32>
    %93 = arith.addf %50, %92 : vector<4x1xf32>
    %c0_31 = arith.constant 0 : index
    %c0_32 = arith.constant 0 : index
    %94 = vector.load %arg6[%c0_31, %c0_32] : memref<4x1xf32, #tpu.memory_space<vmem>>, vector<4x1xf32>
    tpu.vector_store %arg6[%c0_31, %c0_32], %73 {strides = array<i32>} : memref<4x1xf32, #tpu.memory_space<vmem>>, vector<4x1xf32>,
    %c0_33 = arith.constant 0 : index
    %c0_34 = arith.constant 0 : index
    %95 = vector.load %arg4[%c0_33, %c0_34] : memref<4x1xf32, #tpu.memory_space<vmem>>, vector<4x1xf32>
    %96 = arith.addf %95, %93 : vector<4x1xf32>
    %c0_35 = arith.constant 0 : index
    %c0_36 = arith.constant 0 : index
    %97 = vector.load %arg4[%c0_35, %c0_36] : memref<4x1xf32, #tpu.memory_space<vmem>>, vector<4x1xf32>
    tpu.vector_store %arg4[%c0_35, %c0_36], %96 {strides = array<i32>} : memref<4x1xf32, #tpu.memory_space<vmem>>, vector<4x1xf32>,
    return
  }
  func.func @transform_0(%arg0: i32, %arg1: i32) -> (i32, i32) {
    %c0_i32 = arith.constant 0 : i32
    %c0_i32_0 = arith.constant 0 : i32
    return %arg0, %c0_i32 : i32, i32
  }
  func.func @transform_1(%arg0: i32, %arg1: i32) -> (i32, i32) {
    %c0_i32 = arith.constant 0 : i32
    return %arg0, %arg1 : i32, i32
  }
  func.func @transform_2(%arg0: i32, %arg1: i32) -> (i32, i32) {
    %c0_i32 = arith.constant 0 : i32
    %c0_i32_0 = arith.constant 0 : i32
    return %arg0, %c0_i32 : i32, i32
  }
}

</mosaic_0001>

<llo_original>
// kernel: eq.8
$region0: #{eq.8}
  %s0 = inlined_call_operand.vmem [shape: s32[2,16,16], index: 0, kind: input, shape index: {}]
  %s1 = inlined_call_operand.vmem [shape: s32[512], index: 1, kind: output, shape index: {}]
  $region1: #{eq.8} parent=0
    #allocation0 [shape = 'u8[4096]{0}', space=vmem, size = 0x1000, scoped, tag = 'scoped mem for output reshape']
    %v2 = vld [vmem:[%s0] ss:$8 sm:$0xf]
    %vm3 = vcmask 130048
    %4 = vst.msk [vmem:[#allocation0] sm:$0xf] %vm3, %v2
    %s5 = scalar_lea.vmem %s0, 7
    %v6 = vld [vmem:[%s5] ss:$8 sm:$0xf]
    %7 = vrot.lane.b32.xlu0 %v6, 112
    %v8 = vpop.permute.xlu0 %7
    %vm9 = vcmask 1048448
    %10 = vst.msk [vmem:[#allocation0] sm:$0xf] %vm9, %v8
    %s11 = scalar_lea.vmem %s0, 6
    %v12 = vld [vmem:[%s11] ss:$8 sm:$0xf]
    %13 = vrot.lane.b32.xlu0 %v12, 96
    %v14 = vpop.permute.xlu0 %13
    %vm15 = vcmask 917248
    %16 = vst.msk [vmem:[#allocation0] sm:$0xf] %vm15, %v14
    %s17 = scalar_lea.vmem %s0, 5
    %v18 = vld [vmem:[%s17] ss:$8 sm:$0xf]
    %19 = vrot.lane.b32.xlu0 %v18, 80
    %v20 = vpop.permute.xlu0 %19
    %vm21 = vcmask 786048
    %22 = vst.msk [vmem:[#allocation0] sm:$0xf] %vm21, %v20
    %s23 = scalar_lea.vmem %s0, 4
    %v24 = vld [vmem:[%s23] ss:$8 sm:$0xf]
    %25 = vrot.lane.b32.xlu0 %v24, 64
    %v26 = vpop.permute.xlu0 %25
    %vm27 = vcmask 654848
    %28 = vst.msk [vmem:[#allocation0] sm:$0xf] %vm27, %v26
    %s29 = scalar_lea.vmem %s0, 3
    %v30 = vld [vmem:[%s29] ss:$8 sm:$0xf]
    %31 = vrot.lane.b32.xlu0 %v30, 48
    %v32 = vpop.permute.xlu0 %31
    %vm33 = vcmask 523648
    %34 = vst.msk [vmem:[#allocation0] sm:$0xf] %vm33, %v32
    %s35 = scalar_lea.vmem %s0, 2
    %v36 = vld [vmem:[%s35] ss:$8 sm:$0xf]
    %37 = vrot.lane.b32.xlu0 %v36, 32
    %v38 = vpop.permute.xlu0 %37
    %vm39 = vcmask 392448
    %40 = vst.msk [vmem:[#allocation0] sm:$0xf] %vm39, %v38
    %s41 = scalar_lea.vmem %s0, 1
    %v42 = vld [vmem:[%s41] ss:$8 sm:$0xf]
    %43 = vrot.lane.b32.xlu0 %v42, 16
    %v44 = vpop.permute.xlu0 %43
    %vm45 = vcmask 261248
    %46 = vst.msk [vmem:[#allocation0] sm:$0xf] %vm45, %v44
    %s48 = sshllo.u32 0, 4
    %v50 = vld [vmem:[#allocation0] sm:%s48]
    %s51 = sshllo.u32 0, 4
    %52 = vst [vmem:[%s1] sm:%s51] %v50

// kernel: lovasz_loss_softmax.2
$region0: #{lovasz_loss_softmax.2}
  #allocation0 [shape = 'u32[]', space=smem, size = 0x4, offset = 0x4, fixed_abs, tag = 'smem constant byte address 0x4 - core index']
  #allocation1 [shape = 'u32[144,128]{1,0:T(1,128)}', space=vmem, size = 0x12000, scoped, tag = 'internal scratch']
  %s0 = inlined_call_operand.vmem [shape: f32[2,4,256], index: 0, kind: input, shape index: {}]
  %s1 = inlined_call_operand.vmem [shape: s32[2,1,256], index: 1, kind: input, shape index: {}]
  %s2 = inlined_call_operand.vmem [shape: s32[4,512], index: 2, kind: output, shape index: {}]
  %s3 = sld [smem:[#allocation0]]
  $region41: #{lovasz_loss_softmax.2} parent=0
    _
  %s5 = ssub.s32 1, %s3
  %s6 = scalar_select 0, %s5, %s3
  loop: start=0, step=1, limit=4
  $region2: #{lovasz_loss_softmax.2} parent=0 // loop_pre_header
    _
  $region3: #{lovasz_loss_softmax.2} parent=0 // loop_header
    %s8 = sphi 0, %s12
    %p9 = scmp.ge.s32.totalorder %s8, 4
    %s15 = sphi 0, %s27
    %s16 = sphi 0, %s23
    %s17 = sphi 0, %s15
    %s18 = sphi 0, %s16
    %s19 = sphi 0, %s17
    %s20 = sphi 0, %s18
    %s32 = sphi 0, %s34
    %s35 = sphi 0, %s32
    %s36 = sphi 0, %s35
    %s52 = sphi 0, %s36
    %s60 = sphi 0, %s62
    %s63 = sphi 0, %s60
    %s64 = sphi 0, %s63
    %s80 = sphi 0, %s64
    %s88 = sphi 0, %s90
    %s91 = sphi 0, %s88
    %s92 = sphi 0, %s91
    %s108 = sphi 0, %s92
  $region4: #{lovasz_loss_softmax.2} parent=0 // loop_header_branch
    %11 = sbr.rel (%p9) target = $region8
  $region5: #{lovasz_loss_softmax.2} parent=0 // loop_body
    %s13 = ssub.s32 %s8, 1
    %s14 = ssub.s32 %s8, 2
    %s21 = sadd.s32 1, %s16
    %p22 = scmp.ge.s32.totalorder %s21, 1
    %s23 = scalar_select %p22, 0, %s21
    %s24 = sadd.s32 1, %s15
    %s25 = scalar_select %p22, %s24, %s15
    %p26 = scmp.ge.s32.totalorder %s25, 2
    %s27 = scalar_select %p26, 0, %s25
    %s28 = ssub.s32 %s15, %s27
    %s29 = ssub.s32 %s16, %s23
    %s30 = sor.u32 %s28, %s29
    %p31 = scmp.eq.s32.totalorder %s30, 0
    %s33 = sadd.s32 %s32, 1
    %s34 = scalar_select %p31, %s32, %s33
    %p37 = pneg %p31
    %p38 = scmp.eq.s32.totalorder %s8, 1
    %p39 = por %p37, %p38
    %p40 = scmp.ne.s32.totalorder %s32, %s35
    %p41 = scmp.eq.s32.totalorder %s8, 0
    %p42 = por %p40, %p41
    %p43 = scmp.ne.s32.totalorder %s32, %s35
    %p44 = scmp.eq.s32.totalorder %s13, 1
    %p45 = por %p43, %p44
    %p46 = scmp.ne.s32.totalorder %s35, %s36
    %p47 = scmp.eq.s32.totalorder %s13, 0
    %p48 = por %p46, %p47
    %p49 = scmp.ne.s32.totalorder %s35, %s36
    %p50 = scmp.eq.s32.totalorder %s14, 1
    %p51 = por %p49, %p50
    %p53 = scmp.ne.s32.totalorder %s36, %s52
    %p54 = scmp.eq.s32.totalorder %s14, 0
    %p55 = por %p53, %p54
    %s56 = ssub.s32 %s15, %s27
    %s57 = ssub.s32 %s16, %s23
    %s58 = sor.u32 %s56, %s57
    %p59 = scmp.eq.s32.totalorder %s58, 0
    %s61 = sadd.s32 %s60, 1
    %s62 = scalar_select %p59, %s60, %s61
    %p65 = pneg %p59
    %p66 = scmp.eq.s32.totalorder %s8, 1
    %p67 = por %p65, %p66
    %p68 = scmp.ne.s32.totalorder %s60, %s63
    %p69 = scmp.eq.s32.totalorder %s8, 0
    %p70 = por %p68, %p69
    %p71 = scmp.ne.s32.totalorder %s60, %s63
    %p72 = scmp.eq.s32.totalorder %s13, 1
    %p73 = por %p71, %p72
    %p74 = scmp.ne.s32.totalorder %s63, %s64
    %p75 = scmp.eq.s32.totalorder %s13, 0
    %p76 = por %p74, %p75
    %p77 = scmp.ne.s32.totalorder %s63, %s64
    %p78 = scmp.eq.s32.totalorder %s14, 1
    %p79 = por %p77, %p78
    %p81 = scmp.ne.s32.totalorder %s64, %s80
    %p82 = scmp.eq.s32.totalorder %s14, 0
    %p83 = por %p81, %p82
    %s84 = sadd.s32 %s15, %s16
    %s85 = sadd.s32 %s27, %s23
    %s86 = ssub.s32 %s84, %s85
    %p87 = scmp.eq.s32.totalorder %s86, 0
    %s89 = sadd.s32 %s88, 1
    %s90 = scalar_select %p87, %s88, %s89
    %p93 = pneg %p87
    %p94 = scmp.eq.s32.totalorder %s8, 1
    %p95 = por %p93, %p94
    %p96 = scmp.ne.s32.totalorder %s88, %s91
    %p97 = scmp.eq.s32.totalorder %s8, 0
    %p98 = por %p96, %p97
    %p99 = scmp.ne.s32.totalorder %s88, %s91
    %p100 = scmp.eq.s32.totalorder %s13, 1
    %p101 = por %p99, %p100
    %p102 = scmp.ne.s32.totalorder %s91, %s92
    %p103 = scmp.eq.s32.totalorder %s13, 0
    %p104 = por %p102, %p103
    %p105 = scmp.ne.s32.totalorder %s91, %s92
    %p106 = scmp.eq.s32.totalorder %s14, 1
    %p107 = por %p105, %p106
    %p109 = scmp.ne.s32.totalorder %s92, %s108
    %p110 = scmp.eq.s32.totalorder %s14, 0
    %p111 = por %p109, %p110
    %p112 = scmp.le.s32.totalorder 1, %s8
    %p113 = scmp.lt.s32.totalorder %s8, 3
    %p114 = pnand %p112, %p113
    %p115 = pneg %p114
    // Predicated region
    $region9: #{lovasz_loss_softmax.2} parent=5 // pred_check
      _
    $region10: #{lovasz_loss_softmax.2} parent=5 // pred_check_branch
      %117 = sbr.rel (%p114) target = $region12
    $region11: #{lovasz_loss_softmax.2} parent=5 // pred_region
      %s118 = ssub.s32 %s8, 1
    $region12: #{lovasz_loss_softmax.2} parent=5 // pred_fallthru
      _
    %p119 = scmp.lt.s32.totalorder %s8, 2
    // Predicated region
    $region13: #{lovasz_loss_softmax.2} parent=5 // pred_check
      %p120 = pneg %p119
    $region14: #{lovasz_loss_softmax.2} parent=5 // pred_check_branch
      %122 = sbr.rel (%p120) target = $region16
    $region15: #{lovasz_loss_softmax.2} parent=5 // pred_region
      // Predicated region
      $region17: #{lovasz_loss_softmax.2} parent=15 // pred_check
        %p123 = pneg %p42
      $region18: #{lovasz_loss_softmax.2} parent=15 // pred_check_branch
        %125 = sbr.rel (%p123) target = $region20
      $region19: #{lovasz_loss_softmax.2} parent=15 // pred_region
        %s126 = smul.u32 2, %s16
        %p127 = scmp.lt.s32.totalorder %s15, 1
        %s128 = scalar_select %p127, %s15, 1
        %p129 = scmp.lt.s32.totalorder %s126, 1
        %s130 = scalar_select %p129, %s126, 1
        %s131 = smul.addr %s128, 2
        %s132 = sadd.s32 %s130, %s131
        %s133 = smul.addr %s132, 4
        %s134 = scalar_lea.vmem %s0, %s133
        %s135 = smul.u32 2, %s16
      $region20: #{lovasz_loss_softmax.2} parent=15 // pred_fallthru
        _
      // Predicated region
      $region21: #{lovasz_loss_softmax.2} parent=15 // pred_check
        %p136 = pneg %p70
      $region22: #{lovasz_loss_softmax.2} parent=15 // pred_check_branch
        %138 = sbr.rel (%p136) target = $region24
      $region23: #{lovasz_loss_softmax.2} parent=15 // pred_region
        %s139 = smul.u32 2, %s16
        %p140 = scmp.lt.s32.totalorder %s15, 1
        %s141 = scalar_select %p140, %s15, 1
        %p142 = scmp.lt.s32.totalorder %s139, 1
        %s143 = scalar_select %p142, %s139, 1
        %s144 = smul.addr %s141, 2
        %s145 = sadd.s32 %s143, %s144
        %s146 = scalar_lea.vmem %s1, %s145
        %s147 = smul.u32 2, %s16
      $region24: #{lovasz_loss_softmax.2} parent=15 // pred_fallthru
        _
    $region16: #{lovasz_loss_softmax.2} parent=5 // pred_fallthru
      _
    %p148 = scmp.le.s32.totalorder 1, %s8
    %p149 = scmp.lt.s32.totalorder %s8, 3
    %p150 = pnand %p148, %p149
    %p151 = pneg %p150
    // Predicated region
    $region25: #{lovasz_loss_softmax.2} parent=5 // pred_check
      _
    $region26: #{lovasz_loss_softmax.2} parent=5 // pred_check_branch
      %153 = sbr.rel (%p150) target = $region28
    $region27: #{lovasz_loss_softmax.2} parent=5 // pred_region
      %s154 = ssub.s32 %s8, 1
      %s155 = smul.u32 2, %s18
      %p156 = scmp.lt.s32.totalorder %s17, 1
      %s157 = scalar_select %p156, %s17, 1
      %p158 = scmp.lt.s32.totalorder %s155, 1
      %s159 = scalar_select %p158, %s155, 1
      %s160 = smul.addr %s157, 2
      %s161 = sadd.s32 %s159, %s160
      %s162 = smul.addr %s161, 4
      %s163 = scalar_lea.vmem %s0, %s162
      %p164 = pneg %p48
      %p165 = pneg %p45
      %s166 = smul.u32 2, %s18
      %p167 = scmp.lt.s32.totalorder %s17, 1
      %s168 = scalar_select %p167, %s17, 1
      %p169 = scmp.lt.s32.totalorder %s166, 1
      %s170 = scalar_select %p169, %s166, 1
      %s171 = smul.addr %s168, 2
      %s172 = sadd.s32 %s170, %s171
      %s173 = scalar_lea.vmem %s1, %s172
      %p174 = pneg %p76
      %p175 = pneg %p73
      %p176 = pneg %p104
      %p177 = pneg %p101
      %s178 = sadd.s32 %s17, %s18
      %s179 = smul.u32 2, %s178
      %p180 = scmp.lt.s32.totalorder %s179, 3
      %s181 = scalar_select %p180, %s179, 3
      %s182 = smul.addr %s181, 4
      %s183 = scalar_lea.vmem %s2, %s182
      %s184 = smul.u32 2, %s18
      %p185 = scmp.lt.s32.totalorder %s17, 1
      %s186 = scalar_select %p185, %s17, 1
      %p187 = scmp.lt.s32.totalorder %s184, 1
      %s188 = scalar_select %p187, %s184, 1
      %s189 = smul.addr %s186, 2
      %s190 = sadd.s32 %s188, %s189
      %s191 = smul.addr %s190, 4
      %s192 = scalar_lea.vmem %s0, %s191
      %s193 = smul.u32 2, %s18
      %s194 = smul.u32 2, %s18
      %p195 = scmp.lt.s32.totalorder %s17, 1
      %s196 = scalar_select %p195, %s17, 1
      %p197 = scmp.lt.s32.totalorder %s194, 1
      %s198 = scalar_select %p197, %s194, 1
      %s199 = smul.addr %s196, 2
      %s200 = sadd.s32 %s198, %s199
      %s201 = scalar_lea.vmem %s1, %s200
      %s202 = smul.u32 2, %s18
      %s203 = sadd.s32 %s17, %s18
      %s204 = smul.u32 2, %s203
      %p205 = scmp.lt.s32.totalorder %s204, 3
      %s206 = scalar_select %p205, %s204, 3
      %s207 = smul.addr %s206, 4
      %s208 = scalar_lea.vmem %s2, %s207
      %s209 = sadd.s32 %s17, %s18
      %s210 = smul.u32 2, %s209
      %v211 = vld [vmem:[%s192] sm:$0xff]
      %v212 = vld [vmem:[%s201] sm:$0x3]
      %v214 = vcombine.high %v211, %v211
      %vm216 = vcmask 1043456
      %v217 = vsel %vm216, %v211, -inf
      %v218 = vrot.slane %v217, 4
      %v219 = vmax.f32 %v217, %v218
      %v220 = vrot.slane %v219, 2
      %v221 = vmax.f32 %v219, %v220
      %v222 = vrot.slane %v221, 1
      %v223 = vmax.f32 %v221, %v222
      %v224 = vsel %vm216, %v214, -inf
      %v225 = vrot.slane %v224, 4
      %v226 = vmax.f32 %v224, %v225
      %v227 = vrot.slane %v226, 2
      %v228 = vmax.f32 %v226, %v227
      %v229 = vrot.slane %v228, 1
      %v230 = vmax.f32 %v228, %v229
      %v233 = vcombine.low %v223, %v230
      %v235 = vsub.f32 %v211, %v233
      %v236 = vmul.f32 %v235, 1.442695
      %v237 = vpow.pop %v236
      %v239 = vcombine.high %v237, %v237
      %v241 = vsel %vm216, %v237, 0.0
      %v242 = vrot.slane %v241, 4
      %v243 = vadd.f32 %v241, %v242
      %v244 = vrot.slane %v243, 2
      %v245 = vadd.f32 %v243, %v244
      %v246 = vrot.slane %v245, 1
      %v247 = vadd.f32 %v245, %v246
      %v248 = vsel %vm216, %v239, 0.0
      %v249 = vrot.slane %v248, 4
      %v250 = vadd.f32 %v248, %v249
      %v251 = vrot.slane %v250, 2
      %v252 = vadd.f32 %v250, %v251
      %v253 = vrot.slane %v252, 1
      %v254 = vadd.f32 %v252, %v253
      %v255 = vrcp.pop %v247
      %v256 = vmul.f32 1.0, %v255
      %v257 = vrcp.pop %v254
      %v258 = vmul.f32 1.0, %v257
      %v261 = vcombine.low %v256, %v258
      %v263 = vmul.f32 %v237, %v261
      %v264 = vlaneseq
      %v265 = vshrl.u32 %v264, 7
      %v266 = vlaneseq
      %v267 = vshrl.u32 %v266, 7
      %v268 = vsub.s32 0, %v267
      %v269 = vrot.slane %v212, %v268
      %v270 = vlaneseq
      %v271 = vshrl.u32 %v270, 7
      %v272 = vsub.s32 1, %v271
      %v273 = vrot.slane %v212, %v272
      %vm274 = vcmp.eq.s32.totalorder %v269, %v265
      %vm275 = vcmp.eq.s32.totalorder %v273, %v265
      %v276 = vsel %vm274, 1, 0
      %v277 = vsel %vm275, 1, 0
      %v278 = vcvt.s32.f32 %v276
      %v279 = vcvt.s32.f32 %v277
      %v281 = vcombine.high %v263, %v263
      %v283 = vsub.f32 %v278, %v263
      %v284 = vsub.f32 %v279, %v281
      %v285 = vand.u32 2147483647, %v283
      %v286 = vand.u32 2147483647, %v284
      %v289 = vshll.u32 %v285, 1
      %v290 = vshll.u32 %v286, 1
      %v291 = vor.u32 %v289, %v276
      %v292 = vor.u32 %v290, %v277
      %v293 = vxor.u32 %v291, 4294967295
      %v294 = vxor.u32 %v292, 4294967295
      %v295 = vcombine.low %v293, %v294
      %296 = vst [vmem:[%s208] sm:$0xff] %v295
      %s297 = sadd.s32 %s17, %s18
      %s298 = smul.u32 2, %s297
      %p299 = scmp.lt.s32.totalorder %s298, 3
      %s300 = scalar_select %p299, %s298, 3
      %s301 = smul.addr %s300, 4
      %s302 = scalar_lea.vmem %s2, %s301
      // Predicated region
      $region29: #{lovasz_loss_softmax.2} parent=27 // pred_check
        %p303 = pneg %p101
      $region30: #{lovasz_loss_softmax.2} parent=27 // pred_check_branch
        %305 = sbr.rel (%p303) target = $region32
      $region31: #{lovasz_loss_softmax.2} parent=27 // pred_region
        %s306 = sadd.s32 %s17, %s18
        %s307 = smul.u32 2, %s306
      $region32: #{lovasz_loss_softmax.2} parent=27 // pred_fallthru
        _
    $region28: #{lovasz_loss_softmax.2} parent=5 // pred_fallthru
      _
    %p308 = scmp.le.s32.totalorder 2, %s8
    // Predicated region
    $region33: #{lovasz_loss_softmax.2} parent=5 // pred_check
      %p309 = pneg %p308
    $region34: #{lovasz_loss_softmax.2} parent=5 // pred_check_branch
      %311 = sbr.rel (%p309) target = $region36
    $region35: #{lovasz_loss_softmax.2} parent=5 // pred_region
      %s312 = ssub.s32 %s8, 2
      // Predicated region
      $region37: #{lovasz_loss_softmax.2} parent=35 // pred_check
        %p313 = pneg %p107
      $region38: #{lovasz_loss_softmax.2} parent=35 // pred_check_branch
        %315 = sbr.rel (%p313) target = $region40
      $region39: #{lovasz_loss_softmax.2} parent=35 // pred_region
        %s316 = sadd.s32 %s19, %s20
        %s317 = smul.u32 2, %s316
        %p318 = scmp.lt.s32.totalorder %s317, 3
        %s319 = scalar_select %p318, %s317, 3
        %s320 = smul.addr %s319, 4
        %s321 = scalar_lea.vmem %s2, %s320
      $region40: #{lovasz_loss_softmax.2} parent=35 // pred_fallthru
        _
    $region36: #{lovasz_loss_softmax.2} parent=5 // pred_fallthru
      _
  $region6: #{lovasz_loss_softmax.2} parent=0 // loop_footer
    %s12 = sadd.s32 1, %s8
  $region7: #{lovasz_loss_softmax.2} parent=0 // loop_footer_branch
    %7 = sbr.rel target = $region3
  $region8: #{lovasz_loss_softmax.2} parent=0 // loop_exit
    _

// kernel: lovasz_loss_softmax.3
$region0: #{lovasz_loss_softmax.3}
  #allocation0 [shape = 'u32[]', space=smem, size = 0x4, offset = 0x4, fixed_abs, tag = 'smem constant byte address 0x4 - core index']
  #allocation1 [shape = 'u32[144,128]{1,0:T(1,128)}', space=vmem, size = 0x12000, scoped, tag = 'internal scratch']
  #allocation2 [shape = 'bf16[256,256]{1,0:T(16,128)(2,1)}', space=vmem, size = 0x20000, scoped, tag = 'scratch operand']
  #allocation3 [shape = 'f32[4,1]{1,0:T(4,128)}', space=vmem, size = 0x800, scoped, tag = 'scratch operand']
  %s0 = inlined_call_operand.vmem [shape: f32[4,1], index: 0, kind: input, shape index: {}]
  %s1 = inlined_call_operand.vmem [shape: s32[4,512], index: 1, kind: input, shape index: {}]
  %s2 = inlined_call_operand.vmem [shape: f32[4,1], index: 2, kind: output, shape index: {}]
  %s3 = sld [smem:[#allocation0]]
  $region22: #{lovasz_loss_softmax.3} parent=0
    _
  %s5 = ssub.s32 1, %s3
  %s6 = scalar_select 0, %s5, %s3
  // Predicated region
  $region2: #{lovasz_loss_softmax.3} parent=0 // pred_check
    _
  $region3: #{lovasz_loss_softmax.3} parent=0 // pred_check_branch
    %8 = sbr.rel (0) target = $region5
  $region4: #{lovasz_loss_softmax.3} parent=0 // pred_region
    _
  $region5: #{lovasz_loss_softmax.3} parent=0 // pred_fallthru
    _
  // Predicated region
  $region6: #{lovasz_loss_softmax.3} parent=0 // pred_check
    _
  $region7: #{lovasz_loss_softmax.3} parent=0 // pred_check_branch
    %10 = sbr.rel (0) target = $region9
  $region8: #{lovasz_loss_softmax.3} parent=0 // pred_region
    _
  $region9: #{lovasz_loss_softmax.3} parent=0 // pred_fallthru
    _
  %p11 = scmp.eq.s32.totalorder 0, 0
  // Predicated region
  $region10: #{lovasz_loss_softmax.3} parent=0 // pred_check
    %p12 = pneg %p11
  $region11: #{lovasz_loss_softmax.3} parent=0 // pred_check_branch
    %14 = sbr.rel (%p12) target = $region13
  $region12: #{lovasz_loss_softmax.3} parent=0 // pred_region
    %v15 = vlaneseq
    %v16 = vshrl.u32 %v15, 7
    %v17 = vadd.s32 %v16, 8
    %v18 = vadd.s32 %v16, 16
    %v19 = vadd.s32 %v16, 24
    %v20 = vadd.s32 %v16, 32
    %v21 = vadd.s32 %v16, 40
    %v22 = vadd.s32 %v16, 48
    %v23 = vadd.s32 %v16, 56
    %v24 = vadd.s32 %v16, 64
    %v25 = vadd.s32 %v16, 72
    %v26 = vadd.s32 %v16, 80
    %v27 = vadd.s32 %v16, 88
    %v28 = vadd.s32 %v16, 96
    %v29 = vadd.s32 %v16, 104
    %v30 = vadd.s32 %v16, 112
    %v31 = vadd.s32 %v16, 120
    %v32 = vadd.s32 %v16, 128
    %v33 = vadd.s32 %v16, 136
    %v34 = vadd.s32 %v16, 144
    %v35 = vadd.s32 %v16, 152
    %v36 = vadd.s32 %v16, 160
    %v37 = vadd.s32 %v16, 168
    %v38 = vadd.s32 %v16, 176
    %v39 = vadd.s32 %v16, 184
    %v40 = vadd.s32 %v16, 192
    %v41 = vadd.s32 %v16, 200
    %v42 = vadd.s32 %v16, 208
    %v43 = vadd.s32 %v16, 216
    %v44 = vadd.s32 %v16, 224
    %v45 = vadd.s32 %v16, 232
    %v46 = vadd.s32 %v16, 240
    %v47 = vadd.s32 %v16, 248
    %v48 = vlaneseq
    %v49 = vand.u32 %v48, 127
    %v50 = vadd.s32 %v49, 128
    %vm51 = vcmp.le.s32.totalorder %v16, %v49
    %vm52 = vcmp.le.s32.totalorder %v16, %v50
    %vm53 = vcmp.le.s32.totalorder %v17, %v49
    %vm54 = vcmp.le.s32.totalorder %v17, %v50
    %vm55 = vcmp.le.s32.totalorder %v18, %v49
    %vm56 = vcmp.le.s32.totalorder %v18, %v50
    %vm57 = vcmp.le.s32.totalorder %v19, %v49
    %vm58 = vcmp.le.s32.totalorder %v19, %v50
    %vm59 = vcmp.le.s32.totalorder %v20, %v49
    %vm60 = vcmp.le.s32.totalorder %v20, %v50
    %vm61 = vcmp.le.s32.totalorder %v21, %v49
    %vm62 = vcmp.le.s32.totalorder %v21, %v50
    %vm63 = vcmp.le.s32.totalorder %v22, %v49
    %vm64 = vcmp.le.s32.totalorder %v22, %v50
    %vm65 = vcmp.le.s32.totalorder %v23, %v49
    %vm66 = vcmp.le.s32.totalorder %v23, %v50
    %vm67 = vcmp.le.s32.totalorder %v24, %v49
    %vm68 = vcmp.le.s32.totalorder %v24, %v50
    %vm69 = vcmp.le.s32.totalorder %v25, %v49
    %vm70 = vcmp.le.s32.totalorder %v25, %v50
    %vm71 = vcmp.le.s32.totalorder %v26, %v49
    %vm72 = vcmp.le.s32.totalorder %v26, %v50
    %vm73 = vcmp.le.s32.totalorder %v27, %v49
    %vm74 = vcmp.le.s32.totalorder %v27, %v50
    %vm75 = vcmp.le.s32.totalorder %v28, %v49
    %vm76 = vcmp.le.s32.totalorder %v28, %v50
    %vm77 = vcmp.le.s32.totalorder %v29, %v49
    %vm78 = vcmp.le.s32.totalorder %v29, %v50
    %vm79 = vcmp.le.s32.totalorder %v30, %v49
    %vm80 = vcmp.le.s32.totalorder %v30, %v50
    %vm81 = vcmp.le.s32.totalorder %v31, %v49
    %vm82 = vcmp.le.s32.totalorder %v31, %v50
    %vm83 = vcmp.le.s32.totalorder %v32, %v49
    %vm84 = vcmp.le.s32.totalorder %v32, %v50
    %vm85 = vcmp.le.s32.totalorder %v33, %v49
    %vm86 = vcmp.le.s32.totalorder %v33, %v50
    %vm87 = vcmp.le.s32.totalorder %v34, %v49
    %vm88 = vcmp.le.s32.totalorder %v34, %v50
    %vm89 = vcmp.le.s32.totalorder %v35, %v49
    %vm90 = vcmp.le.s32.totalorder %v35, %v50
    %vm91 = vcmp.le.s32.totalorder %v36, %v49
    %vm92 = vcmp.le.s32.totalorder %v36, %v50
    %vm93 = vcmp.le.s32.totalorder %v37, %v49
    %vm94 = vcmp.le.s32.totalorder %v37, %v50
    %vm95 = vcmp.le.s32.totalorder %v38, %v49
    %vm96 = vcmp.le.s32.totalorder %v38, %v50
    %vm97 = vcmp.le.s32.totalorder %v39, %v49
    %vm98 = vcmp.le.s32.totalorder %v39, %v50
    %vm99 = vcmp.le.s32.totalorder %v40, %v49
    %vm100 = vcmp.le.s32.totalorder %v40, %v50
    %vm101 = vcmp.le.s32.totalorder %v41, %v49
    %vm102 = vcmp.le.s32.totalorder %v41, %v50
    %vm103 = vcmp.le.s32.totalorder %v42, %v49
    %vm104 = vcmp.le.s32.totalorder %v42, %v50
    %vm105 = vcmp.le.s32.totalorder %v43, %v49
    %vm106 = vcmp.le.s32.totalorder %v43, %v50
    %vm107 = vcmp.le.s32.totalorder %v44, %v49
    %vm108 = vcmp.le.s32.totalorder %v44, %v50
    %vm109 = vcmp.le.s32.totalorder %v45, %v49
    %vm110 = vcmp.le.s32.totalorder %v45, %v50
    %vm111 = vcmp.le.s32.totalorder %v46, %v49
    %vm112 = vcmp.le.s32.totalorder %v46, %v50
    %vm113 = vcmp.le.s32.totalorder %v47, %v49
    %vm114 = vcmp.le.s32.totalorder %v47, %v50
    %v115 = vsel %vm51, 1, 0
    %v116 = vsel %vm52, 1, 0
    %v117 = vsel %vm53, 1, 0
    %v118 = vsel %vm54, 1, 0
    %v119 = vsel %vm55, 1, 0
    %v120 = vsel %vm56, 1, 0
    %v121 = vsel %vm57, 1, 0
    %v122 = vsel %vm58, 1, 0
    %v123 = vsel %vm59, 1, 0
    %v124 = vsel %vm60, 1, 0
    %v125 = vsel %vm61, 1, 0
    %v126 = vsel %vm62, 1, 0
    %v127 = vsel %vm63, 1, 0
    %v128 = vsel %vm64, 1, 0
    %v129 = vsel %vm65, 1, 0
    %v130 = vsel %vm66, 1, 0
    %v131 = vsel %vm67, 1, 0
    %v132 = vsel %vm68, 1, 0
    %v133 = vsel %vm69, 1, 0
    %v134 = vsel %vm70, 1, 0
    %v135 = vsel %vm71, 1, 0
    %v136 = vsel %vm72, 1, 0
    %v137 = vsel %vm73, 1, 0
    %v138 = vsel %vm74, 1, 0
    %v139 = vsel %vm75, 1, 0
    %v140 = vsel %vm76, 1, 0
    %v141 = vsel %vm77, 1, 0
    %v142 = vsel %vm78, 1, 0
    %v143 = vsel %vm79, 1, 0
    %v144 = vsel %vm80, 1, 0
    %v145 = vsel %vm81, 1, 0
    %v146 = vsel %vm82, 1, 0
    %v147 = vsel %vm83, 1, 0
    %v148 = vsel %vm84, 1, 0
    %v149 = vsel %vm85, 1, 0
    %v150 = vsel %vm86, 1, 0
    %v151 = vsel %vm87, 1, 0
    %v152 = vsel %vm88, 1, 0
    %v153 = vsel %vm89, 1, 0
    %v154 = vsel %vm90, 1, 0
    %v155 = vsel %vm91, 1, 0
    %v156 = vsel %vm92, 1, 0
    %v157 = vsel %vm93, 1, 0
    %v158 = vsel %vm94, 1, 0
    %v159 = vsel %vm95, 1, 0
    %v160 = vsel %vm96, 1, 0
    %v161 = vsel %vm97, 1, 0
    %v162 = vsel %vm98, 1, 0
    %v163 = vsel %vm99, 1, 0
    %v164 = vsel %vm100, 1, 0
    %v165 = vsel %vm101, 1, 0
    %v166 = vsel %vm102, 1, 0
    %v167 = vsel %vm103, 1, 0
    %v168 = vsel %vm104, 1, 0
    %v169 = vsel %vm105, 1, 0
    %v170 = vsel %vm106, 1, 0
    %v171 = vsel %vm107, 1, 0
    %v172 = vsel %vm108, 1, 0
    %v173 = vsel %vm109, 1, 0
    %v174 = vsel %vm110, 1, 0
    %v175 = vsel %vm111, 1, 0
    %v176 = vsel %vm112, 1, 0
    %v177 = vsel %vm113, 1, 0
    %v178 = vsel %vm114, 1, 0
    %v179 = vcvt.s32.f32 %v115
    %v180 = vcvt.s32.f32 %v116
    %v181 = vcvt.s32.f32 %v117
    %v182 = vcvt.s32.f32 %v118
    %v183 = vcvt.s32.f32 %v119
    %v184 = vcvt.s32.f32 %v120
    %v185 = vcvt.s32.f32 %v121
    %v186 = vcvt.s32.f32 %v122
    %v187 = vcvt.s32.f32 %v123
    %v188 = vcvt.s32.f32 %v124
    %v189 = vcvt.s32.f32 %v125
    %v190 = vcvt.s32.f32 %v126
    %v191 = vcvt.s32.f32 %v127
    %v192 = vcvt.s32.f32 %v128
    %v193 = vcvt.s32.f32 %v129
    %v194 = vcvt.s32.f32 %v130
    %v195 = vcvt.s32.f32 %v131
    %v196 = vcvt.s32.f32 %v132
    %v197 = vcvt.s32.f32 %v133
    %v198 = vcvt.s32.f32 %v134
    %v199 = vcvt.s32.f32 %v135
    %v200 = vcvt.s32.f32 %v136
    %v201 = vcvt.s32.f32 %v137
    %v202 = vcvt.s32.f32 %v138
    %v203 = vcvt.s32.f32 %v139
    %v204 = vcvt.s32.f32 %v140
    %v205 = vcvt.s32.f32 %v141
    %v206 = vcvt.s32.f32 %v142
    %v207 = vcvt.s32.f32 %v143
    %v208 = vcvt.s32.f32 %v144
    %v209 = vcvt.s32.f32 %v145
    %v210 = vcvt.s32.f32 %v146
    %v211 = vcvt.s32.f32 %v147
    %v212 = vcvt.s32.f32 %v148
    %v213 = vcvt.s32.f32 %v149
    %v214 = vcvt.s32.f32 %v150
    %v215 = vcvt.s32.f32 %v151
    %v216 = vcvt.s32.f32 %v152
    %v217 = vcvt.s32.f32 %v153
    %v218 = vcvt.s32.f32 %v154
    %v219 = vcvt.s32.f32 %v155
    %v220 = vcvt.s32.f32 %v156
    %v221 = vcvt.s32.f32 %v157
    %v222 = vcvt.s32.f32 %v158
    %v223 = vcvt.s32.f32 %v159
    %v224 = vcvt.s32.f32 %v160
    %v225 = vcvt.s32.f32 %v161
    %v226 = vcvt.s32.f32 %v162
    %v227 = vcvt.s32.f32 %v163
    %v228 = vcvt.s32.f32 %v164
    %v229 = vcvt.s32.f32 %v165
    %v230 = vcvt.s32.f32 %v166
    %v231 = vcvt.s32.f32 %v167
    %v232 = vcvt.s32.f32 %v168
    %v233 = vcvt.s32.f32 %v169
    %v234 = vcvt.s32.f32 %v170
    %v235 = vcvt.s32.f32 %v171
    %v236 = vcvt.s32.f32 %v172
    %v237 = vcvt.s32.f32 %v173
    %v238 = vcvt.s32.f32 %v174
    %v239 = vcvt.s32.f32 %v175
    %v240 = vcvt.s32.f32 %v176
    %v241 = vcvt.s32.f32 %v177
    %v242 = vcvt.s32.f32 %v178
    %v243 = vpack.c.bf16 %v181, %v179
    %v244 = vpack.c.bf16 %v182, %v180
    %v245 = vpack.c.bf16 %v185, %v183
    %v246 = vpack.c.bf16 %v186, %v184
    %v247 = vpack.c.bf16 %v189, %v187
    %v248 = vpack.c.bf16 %v190, %v188
    %v249 = vpack.c.bf16 %v193, %v191
    %v250 = vpack.c.bf16 %v194, %v192
    %v251 = vpack.c.bf16 %v197, %v195
    %v252 = vpack.c.bf16 %v198, %v196
    %v253 = vpack.c.bf16 %v201, %v199
    %v254 = vpack.c.bf16 %v202, %v200
    %v255 = vpack.c.bf16 %v205, %v203
    %v256 = vpack.c.bf16 %v206, %v204
    %v257 = vpack.c.bf16 %v209, %v207
    %v258 = vpack.c.bf16 %v210, %v208
    %v259 = vpack.c.bf16 %v213, %v211
    %v260 = vpack.c.bf16 %v214, %v212
    %v261 = vpack.c.bf16 %v217, %v215
    %v262 = vpack.c.bf16 %v218, %v216
    %v263 = vpack.c.bf16 %v221, %v219
    %v264 = vpack.c.bf16 %v222, %v220
    %v265 = vpack.c.bf16 %v225, %v223
    %v266 = vpack.c.bf16 %v226, %v224
    %v267 = vpack.c.bf16 %v229, %v227
    %v268 = vpack.c.bf16 %v230, %v228
    %v269 = vpack.c.bf16 %v233, %v231
    %v270 = vpack.c.bf16 %v234, %v232
    %v271 = vpack.c.bf16 %v237, %v235
    %v272 = vpack.c.bf16 %v238, %v236
    %v273 = vpack.c.bf16 %v241, %v239
    %v274 = vpack.c.bf16 %v242, %v240
    %275 = vst [vmem:[#allocation2] sm:$0xff] %v243
    %276 = vst [vmem:[#allocation2 + $0x8] sm:$0xff] %v244
    %277 = vst [vmem:[#allocation2 + $0x10] sm:$0xff] %v245
    %278 = vst [vmem:[#allocation2 + $0x18] sm:$0xff] %v246
    %279 = vst [vmem:[#allocation2 + $0x20] sm:$0xff] %v247
    %280 = vst [vmem:[#allocation2 + $0x28] sm:$0xff] %v248
    %281 = vst [vmem:[#allocation2 + $0x30] sm:$0xff] %v249
    %282 = vst [vmem:[#allocation2 + $0x38] sm:$0xff] %v250
    %283 = vst [vmem:[#allocation2 + $0x40] sm:$0xff] %v251
    %284 = vst [vmem:[#allocation2 + $0x48] sm:$0xff] %v252
    %285 = vst [vmem:[#allocation2 + $0x50] sm:$0xff] %v253
    %286 = vst [vmem:[#allocation2 + $0x58] sm:$0xff] %v254
    %287 = vst [vmem:[#allocation2 + $0x60] sm:$0xff] %v255
    %288 = vst [vmem:[#allocation2 + $0x68] sm:$0xff] %v256
    %289 = vst [vmem:[#allocation2 + $0x70] sm:$0xff] %v257
    %290 = vst [vmem:[#allocation2 + $0x78] sm:$0xff] %v258
    %291 = vst [vmem:[#allocation2 + $0x80] sm:$0xff] %v259
    %292 = vst [vmem:[#allocation2 + $0x88] sm:$0xff] %v260
    %293 = vst [vmem:[#allocation2 + $0x90] sm:$0xff] %v261
    %294 = vst [vmem:[#allocation2 + $0x98] sm:$0xff] %v262
    %295 = vst [vmem:[#allocation2 + $0xa0] sm:$0xff] %v263
    %296 = vst [vmem:[#allocation2 + $0xa8] sm:$0xff] %v264
    %297 = vst [vmem:[#allocation2 + $0xb0] sm:$0xff] %v265
    %298 = vst [vmem:[#allocation2 + $0xb8] sm:$0xff] %v266
    %299 = vst [vmem:[#allocation2 + $0xc0] sm:$0xff] %v267
    %300 = vst [vmem:[#allocation2 + $0xc8] sm:$0xff] %v268
    %301 = vst [vmem:[#allocation2 + $0xd0] sm:$0xff] %v269
    %302 = vst [vmem:[#allocation2 + $0xd8] sm:$0xff] %v270
    %303 = vst [vmem:[#allocation2 + $0xe0] sm:$0xff] %v271
    %304 = vst [vmem:[#allocation2 + $0xe8] sm:$0xff] %v272
    %305 = vst [vmem:[#allocation2 + $0xf0] sm:$0xff] %v273
    %306 = vst [vmem:[#allocation2 + $0xf8] sm:$0xff] %v274
    %vm307 = vcmask 3072
    %308 = vst.msk [vmem:[#allocation3] sm:$0xf] %vm307, 0.0
    %309 = vst.msk [vmem:[%s2] sm:$0xf] %vm307, 0.0
  $region13: #{lovasz_loss_softmax.3} parent=0 // pred_fallthru
    _
  %v310 = vld [vmem:[%s0] sm:$0xf]
  %v311 = vld [vmem:[#allocation2] sm:$0xff]
  %v312 = vld [vmem:[#allocation2 + $0x8] sm:$0xff]
  %v313 = vld [vmem:[#allocation2 + $0x10] sm:$0xff]
  %v314 = vld [vmem:[#allocation2 + $0x18] sm:$0xff]
  %v315 = vld [vmem:[#allocation2 + $0x20] sm:$0xff]
  %v316 = vld [vmem:[#allocation2 + $0x28] sm:$0xff]
  %v317 = vld [vmem:[#allocation2 + $0x30] sm:$0xff]
  %v318 = vld [vmem:[#allocation2 + $0x38] sm:$0xff]
  %v319 = vld [vmem:[#allocation2 + $0x40] sm:$0xff]
  %v320 = vld [vmem:[#allocation2 + $0x48] sm:$0xff]
  %v321 = vld [vmem:[#allocation2 + $0x50] sm:$0xff]
  %v322 = vld [vmem:[#allocation2 + $0x58] sm:$0xff]
  %v323 = vld [vmem:[#allocation2 + $0x60] sm:$0xff]
  %v324 = vld [vmem:[#allocation2 + $0x68] sm:$0xff]
  %v325 = vld [vmem:[#allocation2 + $0x70] sm:$0xff]
  %v326 = vld [vmem:[#allocation2 + $0x78] sm:$0xff]
  %v327 = vld [vmem:[#allocation2 + $0x80] sm:$0xff]
  %v328 = vld [vmem:[#allocation2 + $0x88] sm:$0xff]
  %v329 = vld [vmem:[#allocation2 + $0x90] sm:$0xff]
  %v330 = vld [vmem:[#allocation2 + $0x98] sm:$0xff]
  %v331 = vld [vmem:[#allocation2 + $0xa0] sm:$0xff]
  %v332 = vld [vmem:[#allocation2 + $0xa8] sm:$0xff]
  %v333 = vld [vmem:[#allocation2 + $0xb0] sm:$0xff]
  %v334 = vld [vmem:[#allocation2 + $0xb8] sm:$0xff]
  %v335 = vld [vmem:[#allocation2 + $0xc0] sm:$0xff]
  %v336 = vld [vmem:[#allocation2 + $0xc8] sm:$0xff]
  %v337 = vld [vmem:[#allocation2 + $0xd0] sm:$0xff]
  %v338 = vld [vmem:[#allocation2 + $0xd8] sm:$0xff]
  %v339 = vld [vmem:[#allocation2 + $0xe0] sm:$0xff]
  %v340 = vld [vmem:[#allocation2 + $0xe8] sm:$0xff]
  %v341 = vld [vmem:[#allocation2 + $0xf0] sm:$0xff]
  %v342 = vld [vmem:[#allocation2 + $0xf8] sm:$0xff]
  %v343 = vld [vmem:[#allocation3] sm:$0xf]
  %s344 = smul.u32 0, 512
  %v345 = vld [vmem:[%s1] sm:$0xff]
  %v346 = vxor.u32 %v345, 4294967295
  %v347 = vand.u32 %v346, 1
  %v348 = vcvt.s32.f32 %v347
  %v349 = vshra.s32 %v346, 1
  %v350 = vcombine.high %v349, %v349
  %s353 = sadd.s32 %s344, 1
  %v354 = vlaneseq
  %v355 = vand.u32 %v354, 127
  %v356 = vadd.s32 %v355, 128
  %v357 = vstv %s353
  %v358 = vadd.s32 %v357, %v355
  %v359 = vadd.s32 %v357, %v356
  %vm360 = vcmp.le.s32.totalorder %v358, 512
  %vm361 = vcmp.le.s32.totalorder %v359, 512
  %v363 = vcombine.high %v348, %v348
  %v365 = vsel %vm360, %v348, 0.0
  %v366 = vsel %vm361, %v363, 0.0
  %v367 = vsel %vm360, %v349, 0.0
  %v368 = vsel %vm361, %v350, 0.0
  %v369 = vpack.c.bf16 %v365, %v365
  %v370 = vpack.c.bf16 %v366, %v366
  %372 = vset.pattern.permute.xlu0 0
  %373 = vperm.xlu0 %372, %v343
  %v374 = vpop.permute.xlu0 %373
  %376 = vmatprep.subr.bf16.mxu0 %v312
  %377 = vmatpush1.bf16.msra.mxu0 %v311
  %378 = vmatprep.subr.bf16.mxu0 %v314
  %379 = vmatpush1.bf16.msra.mxu0 %v313
  %380 = vmatprep.subr.bf16.mxu0 %v316
  %381 = vmatpush1.bf16.msra.mxu0 %v315
  %382 = vmatprep.subr.bf16.mxu0 %v318
  %383 = vmatpush1.bf16.msra.mxu0 %v317
  %384 = vmatprep.subr.bf16.mxu0 %v320
  %385 = vmatpush1.bf16.msra.mxu0 %v319
  %386 = vmatprep.subr.bf16.mxu0 %v322
  %387 = vmatpush1.bf16.msra.mxu0 %v321
  %388 = vmatprep.subr.bf16.mxu0 %v324
  %389 = vmatpush1.bf16.msra.mxu0 %v323
  %390 = vmatprep.subr.bf16.mxu0 %v326
  %391 = vmatpush1.bf16.msra.mxu0 %v325
  %392 = vmatprep.subr.bf16.mxu0 %v328
  %393 = vmatpush1.bf16.msra.mxu0 %v327
  %394 = vmatprep.subr.bf16.mxu0 %v330
  %395 = vmatpush1.bf16.msra.mxu0 %v329
  %396 = vmatprep.subr.bf16.mxu0 %v332
  %397 = vmatpush1.bf16.msra.mxu0 %v331
  %398 = vmatprep.subr.bf16.mxu0 %v334
  %399 = vmatpush1.bf16.msra.mxu0 %v333
  %400 = vmatprep.subr.bf16.mxu0 %v336
  %401 = vmatpush1.bf16.msra.mxu0 %v335
  %402 = vmatprep.subr.bf16.mxu0 %v338
  %403 = vmatpush1.bf16.msra.mxu0 %v337
  %404 = vmatprep.subr.bf16.mxu0 %v340
  %405 = vmatpush1.bf16.msra.mxu0 %v339
  %406 = vmatprep.subr.bf16.mxu0 %v342
  %407 = vmatpush1.bf16.msra.mxu0 %v341
  %408 = vmatprep.mubr.bf16.mxu0 %v370
  %409 = vmatmul.mubr.bf16.gmra.mrb[0].mxu0 %v369
  %v410 = vpop.f32.mrb[0].mxu0
  %v411 = vadd.f32 %v374, %v410
  %v412 = vpop.f32.mrb[0].mxu0
  %v413 = vadd.f32 %v374, %v412
  %v414 = vpop.f32.mrb[0].mxu0
  %v415 = vpop.f32.mrb[0].mxu0
  %416 = vdwg.mxu0
  %v417 = vcvt.s32.f32 %v358
  %v418 = vcvt.s32.f32 %v359
  %420 = vset.pattern.permute.xlu0 0
  %421 = vperm.xlu0 %420, %v310
  %v422 = vpop.permute.xlu0 %421
  %v424 = vsub.f32 %v422, %v411
  %v425 = vsub.f32 %v422, %v413
  %v426 = vadd.f32 %v422, %v417
  %v427 = vadd.f32 %v422, %v418
  %v428 = vsub.f32 %v426, %v411
  %v429 = vsub.f32 %v427, %v413
  %v430 = vsub.f32 %v428, 1.0
  %v431 = vsub.f32 %v429, 1.0
  %v432 = vadd.f32 %v430, %v365
  %v433 = vadd.f32 %v431, %v366
  %vm434 = vcmp.gt.f32.partialorder %v365, 0.5
  %vm435 = vcmp.gt.f32.partialorder %v366, 0.5
  %v436 = vsel %vm434, %v428, %v424
  %v437 = vsel %vm435, %v429, %v425
  %v438 = vmul.f32 %v428, %v432
  %v439 = vmul.f32 %v429, %v433
  %v440 = vmax.f32 %v438, 1.0
  %v441 = vmax.f32 %v439, 1.0
  %v442 = vrcp.pop %v440
  %v443 = vmul.f32 %v436, %v442
  %v444 = vrcp.pop %v441
  %v445 = vmul.f32 %v437, %v444
  %v446 = vmul.f32 %v367, %v443
  %v447 = vmul.f32 %v368, %v445
  %vm448 = vcmask 1043456
  %v449 = vsel %vm448, %v446, 0.0
  %v450 = vsel %vm448, %v447, 0.0
  %v451 = vadd.f32 %v449, %v450
  %452 = vadd.xlane.f32.xlu0 %v451
  %v453 = vpop.xlane.xlu0 %452
  %v454 = vadd.f32 %v453, 0.0
  %v455 = vld [vmem:[%s1 + $0x8] sm:$0xff]
  %v456 = vxor.u32 %v455, 4294967295
  %v457 = vand.u32 %v456, 1
  %v458 = vcvt.s32.f32 %v457
  %v459 = vshra.s32 %v456, 1
  %v460 = vcombine.high %v459, %v459
  %s463 = sadd.s32 %s344, 257
  %v464 = vstv %s463
  %v465 = vadd.s32 %v464, %v355
  %v466 = vadd.s32 %v464, %v356
  %vm467 = vcmp.le.s32.totalorder %v465, 512
  %vm468 = vcmp.le.s32.totalorder %v466, 512
  %v470 = vcombine.high %v458, %v458
  %v472 = vsel %vm467, %v458, 0.0
  %v473 = vsel %vm468, %v470, 0.0
  %v474 = vsel %vm467, %v459, 0.0
  %v475 = vsel %vm468, %v460, 0.0
  %v476 = vpack.c.bf16 %v472, %v472
  %v477 = vpack.c.bf16 %v473, %v473
  %479 = vset.pattern.permute.xlu0 127
  %480 = vperm.xlu0 %479, %v413
  %v481 = vpop.permute.xlu0 %480
  %483 = vmatprep.subr.bf16.mxu0 %v312
  %484 = vmatpush1.bf16.msra.mxu0 %v311
  %485 = vmatprep.subr.bf16.mxu0 %v314
  %486 = vmatpush1.bf16.msra.mxu0 %v313
  %487 = vmatprep.subr.bf16.mxu0 %v316
  %488 = vmatpush1.bf16.msra.mxu0 %v315
  %489 = vmatprep.subr.bf16.mxu0 %v318
  %490 = vmatpush1.bf16.msra.mxu0 %v317
  %491 = vmatprep.subr.bf16.mxu0 %v320
  %492 = vmatpush1.bf16.msra.mxu0 %v319
  %493 = vmatprep.subr.bf16.mxu0 %v322
  %494 = vmatpush1.bf16.msra.mxu0 %v321
  %495 = vmatprep.subr.bf16.mxu0 %v324
  %496 = vmatpush1.bf16.msra.mxu0 %v323
  %497 = vmatprep.subr.bf16.mxu0 %v326
  %498 = vmatpush1.bf16.msra.mxu0 %v325
  %499 = vmatprep.subr.bf16.mxu0 %v328
  %500 = vmatpush1.bf16.msra.mxu0 %v327
  %501 = vmatprep.subr.bf16.mxu0 %v330
  %502 = vmatpush1.bf16.msra.mxu0 %v329
  %503 = vmatprep.subr.bf16.mxu0 %v332
  %504 = vmatpush1.bf16.msra.mxu0 %v331
  %505 = vmatprep.subr.bf16.mxu0 %v334
  %506 = vmatpush1.bf16.msra.mxu0 %v333
  %507 = vmatprep.subr.bf16.mxu0 %v336
  %508 = vmatpush1.bf16.msra.mxu0 %v335
  %509 = vmatprep.subr.bf16.mxu0 %v338
  %510 = vmatpush1.bf16.msra.mxu0 %v337
  %511 = vmatprep.subr.bf16.mxu0 %v340
  %512 = vmatpush1.bf16.msra.mxu0 %v339
  %513 = vmatprep.subr.bf16.mxu0 %v342
  %514 = vmatpush1.bf16.msra.mxu0 %v341
  %515 = vmatprep.mubr.bf16.mxu0 %v477
  %516 = vmatmul.mubr.bf16.gmra.mrb[0].mxu0 %v476
  %v517 = vpop.f32.mrb[0].mxu0
  %v518 = vadd.f32 %v481, %v517
  %v519 = vpop.f32.mrb[0].mxu0
  %v520 = vadd.f32 %v481, %v519
  %v521 = vpop.f32.mrb[0].mxu0
  %v522 = vpop.f32.mrb[0].mxu0
  %523 = vdwg.mxu0
  %v524 = vcvt.s32.f32 %v465
  %v525 = vcvt.s32.f32 %v466
  %v526 = vsub.f32 %v422, %v518
  %v527 = vsub.f32 %v422, %v520
  %v528 = vadd.f32 %v422, %v524
  %v529 = vadd.f32 %v422, %v525
  %v530 = vsub.f32 %v528, %v518
  %v531 = vsub.f32 %v529, %v520
  %v532 = vsub.f32 %v530, 1.0
  %v533 = vsub.f32 %v531, 1.0
  %v534 = vadd.f32 %v532, %v472
  %v535 = vadd.f32 %v533, %v473
  %vm536 = vcmp.gt.f32.partialorder %v472, 0.5
  %vm537 = vcmp.gt.f32.partialorder %v473, 0.5
  %v538 = vsel %vm536, %v530, %v526
  %v539 = vsel %vm537, %v531, %v527
  %v540 = vmul.f32 %v530, %v534
  %v541 = vmul.f32 %v531, %v535
  %v542 = vmax.f32 %v540, 1.0
  %v543 = vmax.f32 %v541, 1.0
  %v544 = vrcp.pop %v542
  %v545 = vmul.f32 %v538, %v544
  %v546 = vrcp.pop %v543
  %v547 = vmul.f32 %v539, %v546
  %v548 = vmul.f32 %v474, %v545
  %v549 = vmul.f32 %v475, %v547
  %v550 = vsel %vm448, %v548, 0.0
  %v551 = vsel %vm448, %v549, 0.0
  %v552 = vadd.f32 %v550, %v551
  %553 = vadd.xlane.f32.xlu0 %v552
  %v554 = vpop.xlane.xlu0 %553
  %v555 = vadd.f32 %v454, %v554
  %557 = vrot.lane.b32.xlu0 %v520, 1
  %v558 = vpop.permute.xlu0 %557
  %vm560 = vcmask 3072
  %561 = vst.msk [vmem:[#allocation3] sm:$0xf] %vm560, %v558
  %v562 = vld [vmem:[%s2] sm:$0xf]
  %v563 = vadd.f32 %v562, %v555
  %564 = vst.msk [vmem:[%s2] sm:$0xf] %vm560, %v563
  // Predicated region
  $region14: #{lovasz_loss_softmax.3} parent=0 // pred_check
    _
  $region15: #{lovasz_loss_softmax.3} parent=0 // pred_check_branch
    %566 = sbr.rel (0) target = $region17
  $region16: #{lovasz_loss_softmax.3} parent=0 // pred_region
    _
  $region17: #{lovasz_loss_softmax.3} parent=0 // pred_fallthru
    _
  // Predicated region
  $region18: #{lovasz_loss_softmax.3} parent=0 // pred_check
    _
  $region19: #{lovasz_loss_softmax.3} parent=0 // pred_check_branch
    %568 = sbr.rel (0) target = $region21
  $region20: #{lovasz_loss_softmax.3} parent=0 // pred_region
    _
  $region21: #{lovasz_loss_softmax.3} parent=0 // pred_fallthru
    _

</llo_original>
